<compile_context>
chip_gen: v7x
topology: tpu7x:2x2x1
jax: 0.10.0
libtpu: 0.0.40
codegen_flags: <defaults>
</compile_context>

<pallas_src>
import numpy as np
import jax
import jax.numpy as jnp
from jax.experimental import pallas as pl
from jax.experimental.pallas import tpu as pltpu


def _sigmoid(x):
    # tanh-based sigmoid: a single EUP transcendental instead of exp + divide.
    return 0.5 * (jnp.tanh(0.5 * x) + 1.0)


def _softplus(x):
    # PyTorch F.softplus semantics: identity above threshold=20.
    return jnp.where(x > 20.0, x, jnp.log1p(jnp.exp(jnp.minimum(x, 20.0))))


def gcn_layer_kernel(edge_ref, x_ref, wbig_ref, wself_ref, tbig_ref, bn2_ref, o_ref):
    # edge_ref : (tn, num_nbr*Ce)   node-major rows [x_nbr_0|attr_0|...|x_nbr_{nn-1}|attr_{nn-1}]
    # x_ref    : (tn, A)            center-node features (also the residual input)
    # wbig_ref : (num_nbr*Ce, 2*num_nbr*A)  block-diagonal edge-path weight (BN1 scale folded)
    # wself_ref: (A, 2*num_nbr*A)   self-path weight tiled per neighbor slot
    # tbig_ref : (1, 2*num_nbr*A)   folded Linear-bias + BN1 shift
    # bn2_ref  : (2, A)             rows = [bn2 scale, bn2 shift]
    A = x_ref.shape[1]
    NA = wbig_ref.shape[1] // 2
    num_nbr = NA // A

    # One MXU-dense matmul covers all num_nbr edges of every node in the tile;
    # one small matmul adds the (per-node) self contribution.
    z = (jnp.dot(edge_ref[...], wbig_ref[...], preferred_element_type=jnp.float32)
         + jnp.dot(x_ref[...], wself_ref[...], preferred_element_type=jnp.float32)
         + tbig_ref[...])

    # Output lanes: [filt_0..filt_{nn-1} | core_0..core_{nn-1}] -> the chunk(2)
    # split is a 128-lane-aligned slice (free when num_nbr*A is a lane tile).
    gated = _sigmoid(z[:, :NA]) * _softplus(z[:, NA:])        # (tn, num_nbr*A)

    # Neighbor-group reduce: static lane slices (XLU work, otherwise idle here).
    summed = gated[:, 0:A]
    for j in range(1, num_nbr):
        summed = summed + gated[:, j * A:(j + 1) * A]

    s2 = bn2_ref[0:1, :]
    t2 = bn2_ref[1:2, :]
    o_ref[...] = _softplus(x_ref[...] + summed * s2 + t2)


def _round_up(v, m):
    return ((v + m - 1) // m) * m


def gcn_layer(x, edge_index, edge_attr, params, *, num_nbr, tn=None):
    """Fused GCN_Layer forward (BatchNorm folded in inference/eval mode).

    Assumes edges are grouped per center node with
    edge_index[0] == repeat(arange(N), num_nbr) -- the same layout the module's
    `.reshape(-1, num_nbr, A)` already requires.  Checked below whenever the
    indices are concrete.
    """
    N, A = x.shape
    E = edge_index.shape[1]
    nbr_len = edge_attr.shape[1]
    assert E == N * num_nbr, "edge count must equal N * num_nbr (module reshape)"
    Ce = A + nbr_len                      # per-edge features fed to the kernel
    NA = num_nbr * A
    eps = 1e-5

    # Best-effort verification of the grouped-edge / self-index assumption
    # (skipped when edge_index is a tracer under jit).
    try:
        src_np = np.asarray(edge_index[0])
    except Exception:
        src_np = None
    if src_np is not None:
        assert np.array_equal(src_np, np.repeat(np.arange(N), num_nbr)), (
            "gcn_layer requires edge_index[0] == repeat(arange(N), num_nbr)")

    # ---- fold Linear bias + BN1 / BN2 (eval mode) into the weights ----
    w = params["w"].astype(jnp.float32)                       # (2A, 2A + nbr_len)
    b = params["b"].astype(jnp.float32)
    s1 = params["bn1_gamma"] * jax.lax.rsqrt(params["bn1_var"] + eps)
    t1 = params["bn1_beta"] + s1 * (b - params["bn1_mean"])
    s2 = params["bn2_gamma"] * jax.lax.rsqrt(params["bn2_var"] + eps)
    t2 = params["bn2_beta"] - s2 * params["bn2_mean"]
    ws = s1[:, None] * w                                      # BN1 scale folded into weight rows

    # Column split W = [W_nbr | W_self | W_edge]; x[edge_index[0]] is never
    # materialized -- the self path is computed from x_ref inside the kernel.
    we = jnp.concatenate([ws[:, :A], ws[:, 2 * A:]], axis=1).T          # (Ce, 2A)
    wself = ws[:, A:2 * A].T                                            # (A, 2A)

    # Block-diagonal packed weight: all num_nbr edges of a node go through one
    # matmul; output columns ordered [filt_0..filt_{nn-1} | core_0..core_{nn-1}].
    wbig = jnp.zeros((num_nbr * Ce, 2 * NA), jnp.float32)
    for j in range(num_nbr):
        wbig = wbig.at[j * Ce:(j + 1) * Ce, j * A:(j + 1) * A].set(we[:, :A])
        wbig = wbig.at[j * Ce:(j + 1) * Ce, NA + j * A:NA + (j + 1) * A].set(we[:, A:])
    wself_big = jnp.concatenate([jnp.tile(wself[:, :A], (1, num_nbr)),
                                 jnp.tile(wself[:, A:], (1, num_nbr))], axis=1)   # (A, 2NA)
    tbig = jnp.concatenate([jnp.tile(t1[:A], num_nbr),
                            jnp.tile(t1[A:], num_nbr)])[None, :].astype(jnp.float32)  # (1, 2NA)
    bn2 = jnp.stack([s2, t2], axis=0).astype(jnp.float32)                          # (2, A)

    # ---- tiling: >= 4 grid steps (2 pipelined steps per v7x TensorCore),
    #      capped at 512 rows so per-step VMEM stays small on every generation.
    if tn is None:
        tn = max(8, min(512, _round_up(pl.cdiv(N, 4), 8)))
    Np = _round_up(N, tn)

    x_f = x.astype(jnp.float32)
    dst = edge_index[1]
    attr = edge_attr.astype(jnp.float32)
    if Np != N:
        # Pad the small inputs *before* the concat so the padded edge stream is
        # written once (no post-hoc re-materialization of the big array).
        x_f = jnp.pad(x_f, ((0, Np - N), (0, 0)))
        dst = jnp.pad(dst, (0, (Np - N) * num_nbr))
        attr = jnp.pad(attr, ((0, (Np - N) * num_nbr), (0, 0)))

    # glue: data-dependent row gather + concat; the node-major reshape is a
    # metadata-only view of the contiguous concat (no transpose, no extra pass).
    # TODO(synk): the x[edge_index[1]] gather stays in XLA; an in-kernel version
    # would need manual per-row DMA gathers (beyond BlockSpec index_map).
    edge_in = jnp.concatenate([x_f[dst], attr], axis=1).reshape(Np, num_nbr * Ce)

    grid = (Np // tn,)
    out = pl.pallas_call(
        gcn_layer_kernel,
        out_shape=jax.ShapeDtypeStruct((Np, A), jnp.float32),
        grid_spec=pltpu.PrefetchScalarGridSpec(
            num_scalar_prefetch=0,
            grid=grid,
            in_specs=[
                pl.BlockSpec((tn, num_nbr * Ce), lambda i: (i, 0)),       # edge stream tile
                pl.BlockSpec((tn, A), lambda i: (i, 0)),                  # node features tile
                pl.BlockSpec((num_nbr * Ce, 2 * NA), lambda i: (0, 0)),   # W_big (resident)
                pl.BlockSpec((A, 2 * NA), lambda i: (0, 0)),              # W_self (resident)
                pl.BlockSpec((1, 2 * NA), lambda i: (0, 0)),              # bias/BN1 shift
                pl.BlockSpec((2, A), lambda i: (0, 0)),                   # BN2 scale/shift
            ],
            out_specs=pl.BlockSpec((tn, A), lambda i: (i, 0)),
        ),
        compiler_params=pltpu.CompilerParams(
            dimension_semantics=("parallel",)),
    )(edge_in, x_f, wbig, wself_big, tbig, bn2)

    return out[:N]


def gcn_layer_ref(x, edge_index, edge_attr, params, *, num_nbr):
    """Pure-JAX reference replicating the PyTorch forward (eval-mode BN)."""
    A = x.shape[1]
    eps = 1e-5
    tot = jnp.concatenate([x[edge_index[1]], x[edge_index[0]], edge_attr], axis=1)
    z = jnp.dot(tot, params["w"].T, precision=jax.lax.Precision.HIGHEST) + params["b"]
    z = (z - params["bn1_mean"]) / jnp.sqrt(params["bn1_var"] + eps) \
        * params["bn1_gamma"] + params["bn1_beta"]
    g = (_sigmoid(z[:, :A]) * _softplus(z[:, A:])).reshape(-1, num_nbr, A).sum(axis=1)
    g = (g - params["bn2_mean"]) / jnp.sqrt(params["bn2_var"] + eps) \
        * params["bn2_gamma"] + params["bn2_beta"]
    return _softplus(x + g)


if __name__ == "__main__":
    key = jax.random.PRNGKey(0)

    atom_fea_len = 32          # A
    nbr_fea_len = 16
    num_nbr = 4
    N = 64                     # nodes
    E = N * num_nbr            # edges, grouped per center node
    C = 2 * atom_fea_len + nbr_fea_len

    ks = list(jax.random.split(key, 12))
    x = jax.random.normal(ks[0], (N, atom_fea_len), jnp.float32)
    edge_attr = jax.random.normal(ks[1], (E, nbr_fea_len), jnp.float32)
    src = jnp.repeat(jnp.arange(N, dtype=jnp.int32), num_nbr)           # center atom
    dst = jax.random.randint(ks[2], (E,), 0, N, dtype=jnp.int32)        # neighbor atom
    edge_index = jnp.stack([src, dst], axis=0)                          # [2, E]

    lim = (1.0 / C) ** 0.5
    params = {
        "w": jax.random.uniform(ks[3], (2 * atom_fea_len, C), jnp.float32, -lim, lim),
        "b": jax.random.uniform(ks[4], (2 * atom_fea_len,), jnp.float32, -lim, lim),
        # BatchNorm in inference mode (running stats); nontrivial values to
        # exercise the folded affine.
        "bn1_gamma": jax.random.uniform(ks[5], (2 * atom_fea_len,), jnp.float32, 0.5, 1.5),
        "bn1_beta": 0.1 * jax.random.normal(ks[6], (2 * atom_fea_len,), jnp.float32),
        "bn1_mean": 0.1 * jax.random.normal(ks[7], (2 * atom_fea_len,), jnp.float32),
        "bn1_var": jax.random.uniform(ks[8], (2 * atom_fea_len,), jnp.float32, 0.5, 1.5),
        "bn2_gamma": jax.random.uniform(ks[9], (atom_fea_len,), jnp.float32, 0.5, 1.5),
        "bn2_beta": 0.1 * jax.random.normal(ks[10], (atom_fea_len,), jnp.float32),
        "bn2_mean": 0.1 * jax.random.normal(ks[11], (atom_fea_len,), jnp.float32),
        "bn2_var": jnp.ones((atom_fea_len,), jnp.float32),
    }

    out = gcn_layer(x, edge_index, edge_attr, params, num_nbr=num_nbr)
    out = jax.block_until_ready(out)

    ref = gcn_layer_ref(x, edge_index, edge_attr, params, num_nbr=num_nbr)
    assert out.shape == (N, atom_fea_len)
    assert jnp.allclose(out, ref, atol=1e-4, rtol=1e-4), \
        float(jnp.max(jnp.abs(out - ref)))

    print("KERNEL_OK")
</pallas_src>

<mosaic_0001>
module attributes {stable_mosaic.version = 11 : i64} {
  func.func @gcn_layer_kernel(%arg0: i32, %arg1: memref<16x192xf32, #tpu.memory_space<vmem>>, %arg2: memref<16x32xf32, #tpu.memory_space<vmem>>, %arg3: memref<192x256xf32, #tpu.memory_space<vmem>>, %arg4: memref<32x256xf32, #tpu.memory_space<vmem>>, %arg5: memref<1x256xf32, #tpu.memory_space<vmem>>, %arg6: memref<2x32xf32, #tpu.memory_space<vmem>>, %arg7: memref<16x32xf32, #tpu.memory_space<vmem>>) attributes {dimension_semantics = [#tpu.dimension_semantics<parallel>], iteration_bounds = array<i64: 4>, scalar_prefetch = 0 : i64, scratch_operands = 0 : i64, tpu.core_type = #tpu.core_type<tc>, window_params = [{transform_indices = @transform_0, window_bounds = array<i64: 16, 192>}, {transform_indices = @transform_1, window_bounds = array<i64: 16, 32>}, {pipeline_mode = #tpu.pipeline_mode<synchronous>, transform_indices = @transform_2, window_bounds = array<i64: 192, 256>}, {pipeline_mode = #tpu.pipeline_mode<synchronous>, transform_indices = @transform_3, window_bounds = array<i64: 32, 256>}, {pipeline_mode = #tpu.pipeline_mode<synchronous>, transform_indices = @transform_4, window_bounds = array<i64: 1, 256>}, {pipeline_mode = #tpu.pipeline_mode<synchronous>, transform_indices = @transform_5, window_bounds = array<i64: 2, 32>}, {transform_indices = @transform_6, window_bounds = array<i64: 16, 32>}]} {
    %c0 = arith.constant 0 : index
    %c0_0 = arith.constant 0 : index
    %0 = vector.load %arg1[%c0, %c0_0] : memref<16x192xf32, #tpu.memory_space<vmem>>, vector<16x192xf32>
    %c0_1 = arith.constant 0 : index
    %c0_2 = arith.constant 0 : index
    %1 = vector.load %arg3[%c0_1, %c0_2] : memref<192x256xf32, #tpu.memory_space<vmem>>, vector<192x256xf32>
    %cst = arith.constant dense<0.000000e+00> : vector<16x256xf32>
    %2 = tpu.matmul %0, %1, %cst {dimension_numbers = #tpu.dot_dimension_numbers<[1], [0], [0], [1], [0, 0, 1, 1], [], []>} : vector<16x192xf32>, vector<192x256xf32>, vector<16x256xf32> -> vector<16x256xf32>
    %c0_3 = arith.constant 0 : index
    %c0_4 = arith.constant 0 : index
    %3 = vector.load %arg2[%c0_3, %c0_4] : memref<16x32xf32, #tpu.memory_space<vmem>>, vector<16x32xf32>
    %c0_5 = arith.constant 0 : index
    %c0_6 = arith.constant 0 : index
    %4 = vector.load %arg4[%c0_5, %c0_6] : memref<32x256xf32, #tpu.memory_space<vmem>>, vector<32x256xf32>
    %cst_7 = arith.constant dense<0.000000e+00> : vector<16x256xf32>
    %5 = tpu.matmul %3, %4, %cst_7 {dimension_numbers = #tpu.dot_dimension_numbers<[1], [0], [0], [1], [0, 0, 1, 1], [], []>} : vector<16x32xf32>, vector<32x256xf32>, vector<16x256xf32> -> vector<16x256xf32>
    %6 = arith.addf %2, %5 : vector<16x256xf32>
    %c0_8 = arith.constant 0 : index
    %c0_9 = arith.constant 0 : index
    %7 = vector.load %arg5[%c0_8, %c0_9] : memref<1x256xf32, #tpu.memory_space<vmem>>, vector<1x256xf32>
    %8 = vector.broadcast %7 : vector<1x256xf32> to vector<16x256xf32>
    %9 = arith.addf %6, %8 : vector<16x256xf32>
    %10 = vector.extract_strided_slice %9 {offsets = [0, 0], sizes = [16, 128], strides = [1, 1]} : vector<16x256xf32> to vector<16x128xf32>
    %cst_10 = arith.constant 5.000000e-01 : f32
    %11 = vector.broadcast %cst_10 : f32 to vector<16x128xf32>
    %12 = arith.mulf %11, %10 : vector<16x128xf32>
    %13 = math.tanh %12 : vector<16x128xf32>
    %cst_11 = arith.constant 1.000000e+00 : f32
    %14 = vector.broadcast %cst_11 : f32 to vector<16x128xf32>
    %15 = arith.addf %13, %14 : vector<16x128xf32>
    %cst_12 = arith.constant 5.000000e-01 : f32
    %16 = vector.broadcast %cst_12 : f32 to vector<16x128xf32>
    %17 = arith.mulf %16, %15 : vector<16x128xf32>
    %18 = vector.extract_strided_slice %9 {offsets = [0, 128], sizes = [16, 128], strides = [1, 1]} : vector<16x256xf32> to vector<16x128xf32>
    %cst_13 = arith.constant 2.000000e+01 : f32
    %19 = vector.broadcast %cst_13 : f32 to vector<16x128xf32>
    %20 = arith.cmpf ogt, %18, %19 : vector<16x128xf32>
    %cst_14 = arith.constant 2.000000e+01 : f32
    %21 = vector.broadcast %cst_14 : f32 to vector<16x128xf32>
    %22 = arith.minimumf %18, %21 : vector<16x128xf32>
    %23 = math.exp %22 : vector<16x128xf32>
    %24 = math.log1p %23 : vector<16x128xf32>
    %25 = arith.select %20, %18, %24 : vector<16x128xi1>, vector<16x128xf32>
    %26 = arith.mulf %17, %25 : vector<16x128xf32>
    %27 = vector.extract_strided_slice %26 {offsets = [0, 0], sizes = [16, 32], strides = [1, 1]} : vector<16x128xf32> to vector<16x32xf32>
    %28 = vector.extract_strided_slice %26 {offsets = [0, 32], sizes = [16, 32], strides = [1, 1]} : vector<16x128xf32> to vector<16x32xf32>
    %29 = arith.addf %27, %28 : vector<16x32xf32>
    %30 = vector.extract_strided_slice %26 {offsets = [0, 64], sizes = [16, 32], strides = [1, 1]} : vector<16x128xf32> to vector<16x32xf32>
    %31 = arith.addf %29, %30 : vector<16x32xf32>
    %32 = vector.extract_strided_slice %26 {offsets = [0, 96], sizes = [16, 32], strides = [1, 1]} : vector<16x128xf32> to vector<16x32xf32>
    %33 = arith.addf %31, %32 : vector<16x32xf32>
    %c0_15 = arith.constant 0 : index
    %c0_16 = arith.constant 0 : index
    %34 = vector.load %arg6[%c0_15, %c0_16] : memref<2x32xf32, #tpu.memory_space<vmem>>, vector<1x32xf32>
    %c1 = arith.constant 1 : index
    %c0_17 = arith.constant 0 : index
    %35 = vector.load %arg6[%c1, %c0_17] : memref<2x32xf32, #tpu.memory_space<vmem>>, vector<1x32xf32>
    %c0_18 = arith.constant 0 : index
    %c0_19 = arith.constant 0 : index
    %36 = vector.load %arg2[%c0_18, %c0_19] : memref<16x32xf32, #tpu.memory_space<vmem>>, vector<16x32xf32>
    %37 = vector.broadcast %34 : vector<1x32xf32> to vector<16x32xf32>
    %38 = arith.mulf %33, %37 : vector<16x32xf32>
    %39 = arith.addf %36, %38 : vector<16x32xf32>
    %40 = vector.broadcast %35 : vector<1x32xf32> to vector<16x32xf32>
    %41 = arith.addf %39, %40 : vector<16x32xf32>
    %cst_20 = arith.constant 2.000000e+01 : f32
    %42 = vector.broadcast %cst_20 : f32 to vector<16x32xf32>
    %43 = arith.cmpf ogt, %41, %42 : vector<16x32xf32>
    %cst_21 = arith.constant 2.000000e+01 : f32
    %44 = vector.broadcast %cst_21 : f32 to vector<16x32xf32>
    %45 = arith.minimumf %41, %44 : vector<16x32xf32>
    %46 = math.exp %45 : vector<16x32xf32>
    %47 = math.log1p %46 : vector<16x32xf32>
    %48 = arith.select %43, %41, %47 : vector<16x32xi1>, vector<16x32xf32>
    %c0_22 = arith.constant 0 : index
    %c0_23 = arith.constant 0 : index
    %49 = vector.load %arg7[%c0_22, %c0_23] : memref<16x32xf32, #tpu.memory_space<vmem>>, vector<16x32xf32>
    tpu.vector_store %arg7[%c0_22, %c0_23], %48 {strides = array<i32>} : memref<16x32xf32, #tpu.memory_space<vmem>>, vector<16x32xf32>,
    return
  }
  func.func @transform_0(%arg0: i32) -> (i32, i32) {
    %c0_i32 = arith.constant 0 : i32
    %c0_i32_0 = arith.constant 0 : i32
    return %arg0, %c0_i32 : i32, i32
  }
  func.func @transform_1(%arg0: i32) -> (i32, i32) {
    %c0_i32 = arith.constant 0 : i32
    %c0_i32_0 = arith.constant 0 : i32
    return %arg0, %c0_i32 : i32, i32
  }
  func.func @transform_2(%arg0: i32) -> (i32, i32) {
    %c0_i32 = arith.constant 0 : i32
    %c0_i32_0 = arith.constant 0 : i32
    %c0_i32_1 = arith.constant 0 : i32
    return %c0_i32, %c0_i32_0 : i32, i32
  }
  func.func @transform_3(%arg0: i32) -> (i32, i32) {
    %c0_i32 = arith.constant 0 : i32
    %c0_i32_0 = arith.constant 0 : i32
    %c0_i32_1 = arith.constant 0 : i32
    return %c0_i32, %c0_i32_0 : i32, i32
  }
  func.func @transform_4(%arg0: i32) -> (i32, i32) {
    %c0_i32 = arith.constant 0 : i32
    %c0_i32_0 = arith.constant 0 : i32
    %c0_i32_1 = arith.constant 0 : i32
    return %c0_i32, %c0_i32_0 : i32, i32
  }
  func.func @transform_5(%arg0: i32) -> (i32, i32) {
    %c0_i32 = arith.constant 0 : i32
    %c0_i32_0 = arith.constant 0 : i32
    %c0_i32_1 = arith.constant 0 : i32
    return %c0_i32, %c0_i32_0 : i32, i32
  }
  func.func @transform_6(%arg0: i32) -> (i32, i32) {
    %c0_i32 = arith.constant 0 : i32
    %c0_i32_0 = arith.constant 0 : i32
    return %arg0, %c0_i32 : i32, i32
  }
}

</mosaic_0001>

<llo_original>
// kernel: tpu_custom_call.1
$region0: #{tpu_custom_call.1}
  #allocation0 [shape = 'u32[]', space=smem, size = 0x4, offset = 0x4, fixed_abs, tag = 'smem constant byte address 0x4 - core index']
  #allocation1 [shape = 'u32[144,128]{1,0:T(1,128)}', space=vmem, size = 0x12000, scoped, tag = 'internal scratch']
  %s0 = inlined_call_operand.hbm [shape: f32[64,192], index: 0, kind: input, shape index: {}]
  %s1 = inlined_call_operand.vmem [shape: f32[64,32], index: 1, kind: input, shape index: {}]
  %s2 = inlined_call_operand.hbm [shape: f32[192,256], index: 2, kind: input, shape index: {}]
  %s3 = inlined_call_operand.vmem [shape: f32[32,256], index: 3, kind: input, shape index: {}]
  %s4 = inlined_call_operand.vmem [shape: f32[1,256], index: 4, kind: input, shape index: {}]
  %s5 = inlined_call_operand.vmem [shape: f32[2,32], index: 5, kind: input, shape index: {}]
  %s6 = inlined_call_operand.vmem [shape: f32[64,32], index: 6, kind: output, shape index: {}]
  %s7 = sld [smem:[#allocation0]]
  $region65: #{tpu_custom_call.1} parent=0
    _
  %s9 = ssub.s32 1, %s7
  %s10 = scalar_select 0, %s9, %s7
  $region1: #{tpu_custom_call.1} parent=0
    #allocation2 [shape = 'u8[32768]{0}', space=vmem, size = 0x8000, scoped, tag = 'input window, operand 0']
    #allocation3 [shape = 's32[2]{0}', space=sflag, size = 0x8, scoped, tag = 'scoped memory for tpu_custom_call.1']
    #allocation4 [shape = 'u8[196608]{0}', space=vmem, size = 0x30000, scoped, tag = 'input window, operand 2, single buffered']
    #allocation5 [shape = 's32[1]{0}', space=sflag, size = 0x4, scoped, tag = 'scoped memory for tpu_custom_call.1']
    %11 = vsyncpa [#allocation3], 0
    %s12 = scalar_lea.sflag [#allocation3], 1
    %13 = vsyncpa %s12, 0
    %14 = vsyncpa [#allocation5], 0
    loop: start=0, step=1, limit=6
    $region2: #{tpu_custom_call.1} parent=1 // loop_pre_header
      _
    $region3: #{tpu_custom_call.1} parent=1 // loop_header
      %s16 = sphi 0, %s20
      %p17 = scmp.ge.s32.totalorder %s16, 6
      %s26 = sphi 0, %s28
      %s29 = sphi 0, %s26
      %s30 = sphi 0, %s29
      %s46 = sphi 0, %s30
      %s52 = sphi 0, %s54
      %s55 = sphi 0, %s52
      %s56 = sphi 0, %s55
      %s72 = sphi 0, %s56
      %s76 = sphi 0, %s76
      %s78 = sphi 0, %s76
      %s79 = sphi 0, %s78
      %s93 = sphi 0, %s79
      %s97 = sphi 0, %s97
      %s99 = sphi 0, %s97
      %s100 = sphi 0, %s99
      %s114 = sphi 0, %s100
      %s118 = sphi 0, %s118
      %s120 = sphi 0, %s118
      %s121 = sphi 0, %s120
      %s135 = sphi 0, %s121
      %s139 = sphi 0, %s139
      %s141 = sphi 0, %s139
      %s142 = sphi 0, %s141
      %s156 = sphi 0, %s142
      %s162 = sphi 0, %s164
      %s165 = sphi 0, %s162
      %s166 = sphi 0, %s165
      %s182 = sphi 0, %s166
    $region4: #{tpu_custom_call.1} parent=1 // loop_header_branch
      %19 = sbr.rel (%p17) target = $region8
    $region5: #{tpu_custom_call.1} parent=1 // loop_body
      %s21 = ssub.s32 %s16, 1
      %s22 = ssub.s32 %s16, 2
      %s23 = sadd.s32 %s16, 1
      %s24 = ssub.s32 %s16, %s23
      %p25 = scmp.eq.s32.totalorder %s24, 0
      %s27 = sadd.s32 %s26, 1
      %s28 = scalar_select %p25, %s26, %s27
      %p31 = pneg %p25
      %p32 = scmp.eq.s32.totalorder %s16, 3
      %p33 = por %p31, %p32
      %p34 = scmp.ne.s32.totalorder %s26, %s29
      %p35 = scmp.eq.s32.totalorder %s16, 0
      %p36 = por %p34, %p35
      %p37 = scmp.ne.s32.totalorder %s26, %s29
      %p38 = scmp.eq.s32.totalorder %s21, 3
      %p39 = por %p37, %p38
      %p40 = scmp.ne.s32.totalorder %s29, %s30
      %p41 = scmp.eq.s32.totalorder %s21, 0
      %p42 = por %p40, %p41
      %p43 = scmp.ne.s32.totalorder %s29, %s30
      %p44 = scmp.eq.s32.totalorder %s22, 3
      %p45 = por %p43, %p44
      %p47 = scmp.ne.s32.totalorder %s30, %s46
      %p48 = scmp.eq.s32.totalorder %s22, 0
      %p49 = por %p47, %p48
      %s50 = ssub.s32 %s16, %s23
      %p51 = scmp.eq.s32.totalorder %s50, 0
      %s53 = sadd.s32 %s52, 1
      %s54 = scalar_select %p51, %s52, %s53
      %p57 = pneg %p51
      %p58 = scmp.eq.s32.totalorder %s16, 3
      %p59 = por %p57, %p58
      %p60 = scmp.ne.s32.totalorder %s52, %s55
      %p61 = scmp.eq.s32.totalorder %s16, 0
      %p62 = por %p60, %p61
      %p63 = scmp.ne.s32.totalorder %s52, %s55
      %p64 = scmp.eq.s32.totalorder %s21, 3
      %p65 = por %p63, %p64
      %p66 = scmp.ne.s32.totalorder %s55, %s56
      %p67 = scmp.eq.s32.totalorder %s21, 0
      %p68 = por %p66, %p67
      %p69 = scmp.ne.s32.totalorder %s55, %s56
      %p70 = scmp.eq.s32.totalorder %s22, 3
      %p71 = por %p69, %p70
      %p73 = scmp.ne.s32.totalorder %s56, %s72
      %p74 = scmp.eq.s32.totalorder %s22, 0
      %p75 = por %p73, %p74
      %s77 = sadd.s32 %s76, 1
      %p80 = scmp.eq.s32.totalorder %s16, 3
      %p81 = scmp.ne.s32.totalorder %s76, %s78
      %p82 = scmp.eq.s32.totalorder %s16, 0
      %p83 = por %p81, %p82
      %p84 = scmp.ne.s32.totalorder %s76, %s78
      %p85 = scmp.eq.s32.totalorder %s21, 3
      %p86 = por %p84, %p85
      %p87 = scmp.ne.s32.totalorder %s78, %s79
      %p88 = scmp.eq.s32.totalorder %s21, 0
      %p89 = por %p87, %p88
      %p90 = scmp.ne.s32.totalorder %s78, %s79
      %p91 = scmp.eq.s32.totalorder %s22, 3
      %p92 = por %p90, %p91
      %p94 = scmp.ne.s32.totalorder %s79, %s93
      %p95 = scmp.eq.s32.totalorder %s22, 0
      %p96 = por %p94, %p95
      %s98 = sadd.s32 %s97, 1
      %p101 = scmp.eq.s32.totalorder %s16, 3
      %p102 = scmp.ne.s32.totalorder %s97, %s99
      %p103 = scmp.eq.s32.totalorder %s16, 0
      %p104 = por %p102, %p103
      %p105 = scmp.ne.s32.totalorder %s97, %s99
      %p106 = scmp.eq.s32.totalorder %s21, 3
      %p107 = por %p105, %p106
      %p108 = scmp.ne.s32.totalorder %s99, %s100
      %p109 = scmp.eq.s32.totalorder %s21, 0
      %p110 = por %p108, %p109
      %p111 = scmp.ne.s32.totalorder %s99, %s100
      %p112 = scmp.eq.s32.totalorder %s22, 3
      %p113 = por %p111, %p112
      %p115 = scmp.ne.s32.totalorder %s100, %s114
      %p116 = scmp.eq.s32.totalorder %s22, 0
      %p117 = por %p115, %p116
      %s119 = sadd.s32 %s118, 1
      %p122 = scmp.eq.s32.totalorder %s16, 3
      %p123 = scmp.ne.s32.totalorder %s118, %s120
      %p124 = scmp.eq.s32.totalorder %s16, 0
      %p125 = por %p123, %p124
      %p126 = scmp.ne.s32.totalorder %s118, %s120
      %p127 = scmp.eq.s32.totalorder %s21, 3
      %p128 = por %p126, %p127
      %p129 = scmp.ne.s32.totalorder %s120, %s121
      %p130 = scmp.eq.s32.totalorder %s21, 0
      %p131 = por %p129, %p130
      %p132 = scmp.ne.s32.totalorder %s120, %s121
      %p133 = scmp.eq.s32.totalorder %s22, 3
      %p134 = por %p132, %p133
      %p136 = scmp.ne.s32.totalorder %s121, %s135
      %p137 = scmp.eq.s32.totalorder %s22, 0
      %p138 = por %p136, %p137
      %s140 = sadd.s32 %s139, 1
      %p143 = scmp.eq.s32.totalorder %s16, 3
      %p144 = scmp.ne.s32.totalorder %s139, %s141
      %p145 = scmp.eq.s32.totalorder %s16, 0
      %p146 = por %p144, %p145
      %p147 = scmp.ne.s32.totalorder %s139, %s141
      %p148 = scmp.eq.s32.totalorder %s21, 3
      %p149 = por %p147, %p148
      %p150 = scmp.ne.s32.totalorder %s141, %s142
      %p151 = scmp.eq.s32.totalorder %s21, 0
      %p152 = por %p150, %p151
      %p153 = scmp.ne.s32.totalorder %s141, %s142
      %p154 = scmp.eq.s32.totalorder %s22, 3
      %p155 = por %p153, %p154
      %p157 = scmp.ne.s32.totalorder %s142, %s156
      %p158 = scmp.eq.s32.totalorder %s22, 0
      %p159 = por %p157, %p158
      %s160 = ssub.s32 %s16, %s23
      %p161 = scmp.eq.s32.totalorder %s160, 0
      %s163 = sadd.s32 %s162, 1
      %s164 = scalar_select %p161, %s162, %s163
      %p167 = pneg %p161
      %p168 = scmp.eq.s32.totalorder %s16, 3
      %p169 = por %p167, %p168
      %p170 = scmp.ne.s32.totalorder %s162, %s165
      %p171 = scmp.eq.s32.totalorder %s16, 0
      %p172 = por %p170, %p171
      %p173 = scmp.ne.s32.totalorder %s162, %s165
      %p174 = scmp.eq.s32.totalorder %s21, 3
      %p175 = por %p173, %p174
      %p176 = scmp.ne.s32.totalorder %s165, %s166
      %p177 = scmp.eq.s32.totalorder %s21, 0
      %p178 = por %p176, %p177
      %p179 = scmp.ne.s32.totalorder %s165, %s166
      %p180 = scmp.eq.s32.totalorder %s22, 3
      %p181 = por %p179, %p180
      %p183 = scmp.ne.s32.totalorder %s166, %s182
      %p184 = scmp.eq.s32.totalorder %s22, 0
      %p185 = por %p183, %p184
      %p186 = scmp.le.s32.totalorder 1, %s16
      %p187 = scmp.lt.s32.totalorder %s16, 5
      %p188 = pnand %p186, %p187
      %p189 = pneg %p188
      // Predicated region
      $region9: #{tpu_custom_call.1} parent=5 // pred_check
        _
      $region10: #{tpu_custom_call.1} parent=5 // pred_check_branch
        %191 = sbr.rel (%p188) target = $region12
      $region11: #{tpu_custom_call.1} parent=5 // pred_region
        %s192 = ssub.s32 %s16, 1
        // Predicated region
        $region13: #{tpu_custom_call.1} parent=11 // pred_check
          %p193 = pneg %p89
        $region14: #{tpu_custom_call.1} parent=11 // pred_check_branch
          %195 = sbr.rel (%p193) target = $region16
        $region15: #{tpu_custom_call.1} parent=11 // pred_region
          %s197 = ssub.s32 6144, 6144
          %198 = vsyncadd [#allocation5], %s197
          %s199 = sshll.u32 [#allocation4], 4
          %s200 = int_to_ptr.vmem [resolvable:$true] %s199
          %205 = dma.hbm_to_vmem [thread:$0]  %s2, 6144, %s200, [#allocation5], 256, 256, 16
        $region16: #{tpu_custom_call.1} parent=11 // pred_fallthru
          _
        // Predicated region
        $region17: #{tpu_custom_call.1} parent=11 // pred_check
          %p206 = pneg %p110
        $region18: #{tpu_custom_call.1} parent=11 // pred_check_branch
          %208 = sbr.rel (%p206) target = $region20
        $region19: #{tpu_custom_call.1} parent=11 // pred_region
          _
        $region20: #{tpu_custom_call.1} parent=11 // pred_fallthru
          _
        // Predicated region
        $region21: #{tpu_custom_call.1} parent=11 // pred_check
          %p209 = pneg %p131
        $region22: #{tpu_custom_call.1} parent=11 // pred_check_branch
          %211 = sbr.rel (%p209) target = $region24
        $region23: #{tpu_custom_call.1} parent=11 // pred_region
          _
        $region24: #{tpu_custom_call.1} parent=11 // pred_fallthru
          _
        // Predicated region
        $region25: #{tpu_custom_call.1} parent=11 // pred_check
          %p212 = pneg %p152
        $region26: #{tpu_custom_call.1} parent=11 // pred_check_branch
          %214 = sbr.rel (%p212) target = $region28
        $region27: #{tpu_custom_call.1} parent=11 // pred_region
          _
        $region28: #{tpu_custom_call.1} parent=11 // pred_fallthru
          _
      $region12: #{tpu_custom_call.1} parent=5 // pred_fallthru
        _
      %p215 = scmp.lt.s32.totalorder %s16, 4
      // Predicated region
      $region29: #{tpu_custom_call.1} parent=5 // pred_check
        %p216 = pneg %p215
      $region30: #{tpu_custom_call.1} parent=5 // pred_check_branch
        %218 = sbr.rel (%p216) target = $region32
      $region31: #{tpu_custom_call.1} parent=5 // pred_region
        // Predicated region
        $region33: #{tpu_custom_call.1} parent=31 // pred_check
          %p219 = pneg %p36
        $region34: #{tpu_custom_call.1} parent=31 // pred_check_branch
          %221 = sbr.rel (%p219) target = $region36
        $region35: #{tpu_custom_call.1} parent=31 // pred_region
          %s222 = sand.u32 %s26, 1
          %s223 = scalar_lea.sflag [#allocation3], %s222
          %s224 = sand.u32 %s26, 1
          %s225 = smul.addr %s224, 32
          %s226 = scalar_lea.vmem [#allocation2], %s225
          %s227 = smul.u32 2, %s16
          %s229 = ssub.s32 512, 512
          %230 = vsyncadd %s223, %s229
          %s231 = smul.addr %s227, 2
          %s232 = smul.addr %s231, 128
          %s233 = scalar_lea.hbm %s0, %s232
          %s234 = sshll.u32 %s226, 4
          %s235 = int_to_ptr.vmem [resolvable:$true] %s234
          %240 = dma.hbm_to_vmem [thread:$0]  %s233, 512, %s235, %s223, 256, 256, 16
        $region36: #{tpu_custom_call.1} parent=31 // pred_fallthru
          _
        // Predicated region
        $region37: #{tpu_custom_call.1} parent=31 // pred_check
          %p241 = pneg %p62
        $region38: #{tpu_custom_call.1} parent=31 // pred_check_branch
          %243 = sbr.rel (%p241) target = $region40
        $region39: #{tpu_custom_call.1} parent=31 // pred_region
          %s244 = smul.u32 2, %s16
          %p245 = scmp.lt.s32.totalorder %s244, 7
          %s246 = scalar_select %p245, %s244, 7
          %s247 = smul.addr %s246, 8
          %s248 = scalar_lea.vmem %s1, %s247
          %s249 = smul.u32 2, %s16
        $region40: #{tpu_custom_call.1} parent=31 // pred_fallthru
          _
      $region32: #{tpu_custom_call.1} parent=5 // pred_fallthru
        _
      %p250 = scmp.le.s32.totalorder 1, %s16
      %p251 = scmp.lt.s32.totalorder %s16, 5
      %p252 = pnand %p250, %p251
      %p253 = pneg %p252
      // Predicated region
      $region41: #{tpu_custom_call.1} parent=5 // pred_check
        _
      $region42: #{tpu_custom_call.1} parent=5 // pred_check_branch
        %255 = sbr.rel (%p252) target = $region44
      $region43: #{tpu_custom_call.1} parent=5 // pred_region
        %s256 = ssub.s32 %s16, 1
        %s257 = sand.u32 %s29, 1
        %s258 = scalar_lea.sflag [#allocation3], %s257
        %s259 = sand.u32 %s29, 1
        %s260 = smul.addr %s259, 32
        %s261 = scalar_lea.vmem [#allocation2], %s260
        // Predicated region
        $region45: #{tpu_custom_call.1} parent=43 // pred_check
          %p262 = pneg %p42
        $region46: #{tpu_custom_call.1} parent=43 // pred_check_branch
          %264 = sbr.rel (%p262) target = $region48
        $region47: #{tpu_custom_call.1} parent=43 // pred_region
          %265 = dma.done %s258, 512
        $region48: #{tpu_custom_call.1} parent=43 // pred_fallthru
          _
        // Predicated region
        $region49: #{tpu_custom_call.1} parent=43 // pred_check
          %p266 = pneg %p89
        $region50: #{tpu_custom_call.1} parent=43 // pred_check_branch
          %268 = sbr.rel (%p266) target = $region52
        $region51: #{tpu_custom_call.1} parent=43 // pred_region
          %269 = dma.done [#allocation5], 6144
        $region52: #{tpu_custom_call.1} parent=43 // pred_fallthru
          _
        %s270 = sand.u32 %s29, 1
        %s271 = scalar_lea.sflag [#allocation3], %s270
        %s272 = sand.u32 %s29, 1
        %s273 = smul.addr %s272, 32
        %s274 = scalar_lea.vmem [#allocation2], %s273
        %p275 = pneg %p42
        %p276 = pneg %p39
        %s277 = smul.u32 2, %s21
        %p278 = scmp.lt.s32.totalorder %s277, 7
        %s279 = scalar_select %p278, %s277, 7
        %s280 = smul.addr %s279, 8
        %s281 = scalar_lea.vmem %s1, %s280
        %p282 = pneg %p68
        %p283 = pneg %p65
        %p284 = pneg %p89
        %p285 = pneg %p86
        %p286 = pneg %p110
        %p287 = pneg %p107
        %p288 = pneg %p131
        %p289 = pneg %p128
        %p290 = pneg %p152
        %p291 = pneg %p149
        %p292 = pneg %p178
        %p293 = pneg %p175
        %s294 = smul.u32 2, %s21
        %p295 = scmp.lt.s32.totalorder %s294, 7
        %s296 = scalar_select %p295, %s294, 7
        %s297 = smul.addr %s296, 8
        %s298 = scalar_lea.vmem %s6, %s297
        %s299 = smul.u32 2, %s21
        %s300 = smul.u32 2, %s21
        %p301 = scmp.lt.s32.totalorder %s300, 7
        %s302 = scalar_select %p301, %s300, 7
        %s303 = smul.addr %s302, 8
        %s304 = scalar_lea.vmem %s1, %s303
        %s305 = smul.u32 2, %s21
        %s306 = smul.u32 2, %s21
        %p307 = scmp.lt.s32.totalorder %s306, 7
        %s308 = scalar_select %p307, %s306, 7
        %s309 = smul.addr %s308, 8
        %s310 = scalar_lea.vmem %s6, %s309
        %s311 = smul.u32 2, %s21
        %v312 = vld [vmem:[%s261] sm:$0xff]
        %v313 = vld [vmem:[%s261 + $0x8] sm:$0xff]
        %v314 = vld [vmem:[%s261 + $0x10] sm:$0xff]
        %v315 = vld [vmem:[%s261 + $0x18] sm:$0xff]
        %v316 = vld [vmem:[#allocation4] sm:$0xff]
        %v317 = vld [vmem:[#allocation4 + $0x8] sm:$0xff]
        %v318 = vld [vmem:[#allocation4 + $0x10] sm:$0xff]
        %v319 = vld [vmem:[#allocation4 + $0x18] sm:$0xff]
        %v320 = vld [vmem:[#allocation4 + $0x20] sm:$0xff]
        %v321 = vld [vmem:[#allocation4 + $0x28] sm:$0xff]
        %v322 = vld [vmem:[#allocation4 + $0x30] sm:$0xff]
        %v323 = vld [vmem:[#allocation4 + $0x38] sm:$0xff]
        %v324 = vld [vmem:[#allocation4 + $0x40] sm:$0xff]
        %v325 = vld [vmem:[#allocation4 + $0x48] sm:$0xff]
        %v326 = vld [vmem:[#allocation4 + $0x50] sm:$0xff]
        %v327 = vld [vmem:[#allocation4 + $0x58] sm:$0xff]
        %v328 = vld [vmem:[#allocation4 + $0x60] sm:$0xff]
        %v329 = vld [vmem:[#allocation4 + $0x68] sm:$0xff]
        %v330 = vld [vmem:[#allocation4 + $0x70] sm:$0xff]
        %v331 = vld [vmem:[#allocation4 + $0x78] sm:$0xff]
        %v332 = vld [vmem:[#allocation4 + $0x80] sm:$0xff]
        %v333 = vld [vmem:[#allocation4 + $0x88] sm:$0xff]
        %v334 = vld [vmem:[#allocation4 + $0x90] sm:$0xff]
        %v335 = vld [vmem:[#allocation4 + $0x98] sm:$0xff]
        %v336 = vld [vmem:[#allocation4 + $0xa0] sm:$0xff]
        %v337 = vld [vmem:[#allocation4 + $0xa8] sm:$0xff]
        %v338 = vld [vmem:[#allocation4 + $0xb0] sm:$0xff]
        %v339 = vld [vmem:[#allocation4 + $0xb8] sm:$0xff]
        %v340 = vld [vmem:[#allocation4 + $0xc0] sm:$0xff]
        %v341 = vld [vmem:[#allocation4 + $0xc8] sm:$0xff]
        %v342 = vld [vmem:[#allocation4 + $0xd0] sm:$0xff]
        %v343 = vld [vmem:[#allocation4 + $0xd8] sm:$0xff]
        %v344 = vld [vmem:[#allocation4 + $0xe0] sm:$0xff]
        %v345 = vld [vmem:[#allocation4 + $0xe8] sm:$0xff]
        %v346 = vld [vmem:[#allocation4 + $0xf0] sm:$0xff]
        %v347 = vld [vmem:[#allocation4 + $0xf8] sm:$0xff]
        %v348 = vld [vmem:[#allocation4 + $0x100] sm:$0xff]
        %v349 = vld [vmem:[#allocation4 + $0x108] sm:$0xff]
        %v350 = vld [vmem:[#allocation4 + $0x110] sm:$0xff]
        %v351 = vld [vmem:[#allocation4 + $0x118] sm:$0xff]
        %v352 = vld [vmem:[#allocation4 + $0x120] sm:$0xff]
        %v353 = vld [vmem:[#allocation4 + $0x128] sm:$0xff]
        %v354 = vld [vmem:[#allocation4 + $0x130] sm:$0xff]
        %v355 = vld [vmem:[#allocation4 + $0x138] sm:$0xff]
        %v356 = vld [vmem:[#allocation4 + $0x140] sm:$0xff]
        %v357 = vld [vmem:[#allocation4 + $0x148] sm:$0xff]
        %v358 = vld [vmem:[#allocation4 + $0x150] sm:$0xff]
        %v359 = vld [vmem:[#allocation4 + $0x158] sm:$0xff]
        %v360 = vld [vmem:[#allocation4 + $0x160] sm:$0xff]
        %v361 = vld [vmem:[#allocation4 + $0x168] sm:$0xff]
        %v362 = vld [vmem:[#allocation4 + $0x170] sm:$0xff]
        %v363 = vld [vmem:[#allocation4 + $0x178] sm:$0xff]
        %v364 = vld [vmem:[%s304] sm:$0xff]
        %v365 = vld [vmem:[%s304 + $0x8] sm:$0xff]
        %v366 = vld [vmem:[%s3] sm:$0xff]
        %v367 = vld [vmem:[%s3 + $0x8] sm:$0xff]
        %v368 = vld [vmem:[%s3 + $0x10] sm:$0xff]
        %v369 = vld [vmem:[%s3 + $0x18] sm:$0xff]
        %v370 = vld [vmem:[%s3 + $0x20] sm:$0xff]
        %v371 = vld [vmem:[%s3 + $0x28] sm:$0xff]
        %v372 = vld [vmem:[%s3 + $0x30] sm:$0xff]
        %v373 = vld [vmem:[%s3 + $0x38] sm:$0xff]
        %vm374 = vcmask 261120
        %v376 = vsel %vm374, %v364, 0
        %v379 = vsel %vm374, %v365, 0
        %381 = vmatprep.subr.mxu0 %v367
        %382 = vmatpush1.msra.mxu0 %v366
        %383 = vmatprep.subr.mxu0 %v369
        %384 = vmatpush1.msra.mxu0 %v368
        %385 = vmatprep.subr.mxu0 %v371
        %386 = vmatpush1.msra.mxu0 %v370
        %387 = vmatprep.subr.mxu0 %v373
        %388 = vmatpush1.msra.mxu0 %v372
        %389 = vmatprep.subr.mxu0 0.0
        %390 = vmatpush1.msra.mxu0 0.0
        %391 = vmatprep.subr.mxu0 0.0
        %392 = vmatpush1.msra.mxu0 0.0
        %393 = vmatprep.subr.mxu0 0.0
        %394 = vmatpush1.msra.mxu0 0.0
        %395 = vmatprep.subr.mxu0 0.0
        %396 = vmatpush1.msra.mxu0 0.0
        %397 = vmatprep.subr.mxu0 0.0
        %398 = vmatpush1.msra.mxu0 0.0
        %399 = vmatprep.subr.mxu0 0.0
        %400 = vmatpush1.msra.mxu0 0.0
        %401 = vmatprep.subr.mxu0 0.0
        %402 = vmatpush1.msra.mxu0 0.0
        %403 = vmatprep.subr.mxu0 0.0
        %404 = vmatpush1.msra.mxu0 0.0
        %405 = vmatprep.subr.mxu0 0.0
        %406 = vmatpush1.msra.mxu0 0.0
        %407 = vmatprep.subr.mxu0 0.0
        %408 = vmatpush1.msra.mxu0 0.0
        %409 = vmatprep.subr.mxu0 0.0
        %410 = vmatpush1.msra.mxu0 0.0
        %411 = vmatprep.subr.mxu0 0.0
        %412 = vmatpush1.msra.mxu0 0.0
        %413 = vmatprep.subr.mxu0 0.0
        %414 = vmatpush1.msra.mxu0 0.0
        %415 = vmatprep.subr.mxu0 0.0
        %416 = vmatpush1.msra.mxu0 0.0
        %417 = vmatprep.subr.mxu0 0.0
        %418 = vmatpush1.msra.mxu0 0.0
        %419 = vmatprep.subr.mxu0 0.0
        %420 = vmatpush1.msra.mxu0 0.0
        %421 = vmatprep.subr.mxu0 0.0
        %422 = vmatpush1.msra.mxu0 0.0
        %423 = vmatprep.subr.mxu0 0.0
        %424 = vmatpush1.msra.mxu0 0.0
        %425 = vmatprep.subr.mxu0 0.0
        %426 = vmatpush1.msra.mxu0 0.0
        %427 = vmatprep.subr.mxu0 0.0
        %428 = vmatpush1.msra.mxu0 0.0
        %429 = vmatprep.subr.mxu0 0.0
        %430 = vmatpush1.msra.mxu0 0.0
        %431 = vmatprep.subr.mxu0 0.0
        %432 = vmatpush1.msra.mxu0 0.0
        %433 = vmatprep.subr.mxu0 0.0
        %434 = vmatpush1.msra.mxu0 0.0
        %435 = vmatprep.subr.mxu0 0.0
        %436 = vmatpush1.msra.mxu0 0.0
        %437 = vmatprep.subr.mxu0 0.0
        %438 = vmatpush1.msra.mxu0 0.0
        %439 = vmatprep.subr.mxu0 0.0
        %440 = vmatpush1.msra.mxu0 0.0
        %441 = vmatprep.subr.mxu0 0.0
        %442 = vmatpush1.msra.mxu0 0.0
        %443 = vmatprep.subr.mxu0 0.0
        %444 = vmatpush1.msra.mxu0 0.0
        %445 = vmatprep.mubr.f32.mxu0 0.0
        %446 = vmatmul.mubr.f32.gmra.mrb[0].mxu0 %v376
        %v447 = vpop.f32.mrb[0].mxu0
        %v448 = vadd.f32 0.0, %v447
        %v449 = vpop.f32.mrb[0].mxu0
        %v450 = vadd.f32 0.0, %v449
        %451 = vmatprep.mubr.f32.mxu0 0.0
        %452 = vmatmul.mubr.f32.gmra.mrb[0].mxu0 %v379
        %v453 = vpop.f32.mrb[0].mxu0
        %v454 = vadd.f32 0.0, %v453
        %v455 = vpop.f32.mrb[0].mxu0
        %v456 = vadd.f32 0.0, %v455
        %457 = vdwg.mxu0
        %vm458 = vcmask 523264
        %v460 = vsel %vm458, %v313, 0
        %v463 = vsel %vm458, %v315, 0
        %465 = vmatprep.subr.mxu0 %v317
        %466 = vmatpush1.msra.mxu0 %v316
        %467 = vmatprep.subr.mxu0 %v319
        %468 = vmatpush1.msra.mxu0 %v318
        %469 = vmatprep.subr.mxu0 %v321
        %470 = vmatpush1.msra.mxu0 %v320
        %471 = vmatprep.subr.mxu0 %v323
        %472 = vmatpush1.msra.mxu0 %v322
        %473 = vmatprep.subr.mxu0 %v325
        %474 = vmatpush1.msra.mxu0 %v324
        %475 = vmatprep.subr.mxu0 %v327
        %476 = vmatpush1.msra.mxu0 %v326
        %477 = vmatprep.subr.mxu0 %v329
        %478 = vmatpush1.msra.mxu0 %v328
        %479 = vmatprep.subr.mxu0 %v331
        %480 = vmatpush1.msra.mxu0 %v330
        %481 = vmatprep.subr.mxu0 %v333
        %482 = vmatpush1.msra.mxu0 %v332
        %483 = vmatprep.subr.mxu0 %v335
        %484 = vmatpush1.msra.mxu0 %v334
        %485 = vmatprep.subr.mxu0 %v337
        %486 = vmatpush1.msra.mxu0 %v336
        %487 = vmatprep.subr.mxu0 %v339
        %488 = vmatpush1.msra.mxu0 %v338
        %489 = vmatprep.subr.mxu0 %v341
        %490 = vmatpush1.msra.mxu0 %v340
        %491 = vmatprep.subr.mxu0 %v343
        %492 = vmatpush1.msra.mxu0 %v342
        %493 = vmatprep.subr.mxu0 %v345
        %494 = vmatpush1.msra.mxu0 %v344
        %495 = vmatprep.subr.mxu0 %v347
        %496 = vmatpush1.msra.mxu0 %v346
        %497 = vmatprep.subr.mxu0 %v349
        %498 = vmatpush1.msra.mxu0 %v348
        %499 = vmatprep.subr.mxu0 %v351
        %500 = vmatpush1.msra.mxu0 %v350
        %501 = vmatprep.subr.mxu0 %v353
        %502 = vmatpush1.msra.mxu0 %v352
        %503 = vmatprep.subr.mxu0 %v355
        %504 = vmatpush1.msra.mxu0 %v354
        %505 = vmatprep.subr.mxu0 %v357
        %506 = vmatpush1.msra.mxu0 %v356
        %507 = vmatprep.subr.mxu0 %v359
        %508 = vmatpush1.msra.mxu0 %v358
        %509 = vmatprep.subr.mxu0 %v361
        %510 = vmatpush1.msra.mxu0 %v360
        %511 = vmatprep.subr.mxu0 %v363
        %512 = vmatpush1.msra.mxu0 %v362
        %513 = vmatprep.subr.mxu0 0.0
        %514 = vmatpush1.msra.mxu0 0.0
        %515 = vmatprep.subr.mxu0 0.0
        %516 = vmatpush1.msra.mxu0 0.0
        %517 = vmatprep.subr.mxu0 0.0
        %518 = vmatpush1.msra.mxu0 0.0
        %519 = vmatprep.subr.mxu0 0.0
        %520 = vmatpush1.msra.mxu0 0.0
        %521 = vmatprep.subr.mxu0 0.0
        %522 = vmatpush1.msra.mxu0 0.0
        %523 = vmatprep.subr.mxu0 0.0
        %524 = vmatpush1.msra.mxu0 0.0
        %525 = vmatprep.subr.mxu0 0.0
        %526 = vmatpush1.msra.mxu0 0.0
        %527 = vmatprep.subr.mxu0 0.0
        %528 = vmatpush1.msra.mxu0 0.0
        %529 = vmatprep.mubr.f32.mxu0 %v460
        %530 = vmatmul.mubr.f32.gmra.mrb[0].mxu0 %v312
        %v531 = vpop.f32.mrb[0].mxu0
        %v532 = vadd.f32 %v448, %v531
        %v533 = vpop.f32.mrb[0].mxu0
        %v534 = vadd.f32 %v450, %v533
        %535 = vmatprep.mubr.f32.mxu0 %v463
        %536 = vmatmul.mubr.f32.gmra.mrb[0].mxu0 %v314
        %v537 = vpop.f32.mrb[0].mxu0
        %v538 = vadd.f32 %v454, %v537
        %v539 = vpop.f32.mrb[0].mxu0
        %v540 = vadd.f32 %v456, %v539
        %541 = vdwg.mxu0
        %v542 = vld [vmem:[%s4] sm:$0x3]
        %v544 = vlaneseq
        %v545 = vshrl.u32 %v544, 7
        %v546 = vsub.s32 0, %v545
        %v547 = vrot.slane %v542, %v546
        %v548 = vlaneseq
        %v549 = vshrl.u32 %v548, 7
        %v550 = vsub.s32 1, %v549
        %v551 = vrot.slane %v542, %v550
        %v554 = vadd.f32 %v532, %v547
        %v555 = vadd.f32 %v534, %v551
        %v556 = vadd.f32 %v538, %v547
        %v557 = vadd.f32 %v540, %v551
        %v558 = vmul.f32 %v554, 0.5
        %v559 = vmul.f32 %v556, 0.5
        %v560 = vtanh.pop %v558
        %v561 = vtanh.pop %v559
        %v562 = vadd.f32 %v560, 1.0
        %v563 = vadd.f32 %v561, 1.0
        %v564 = vmul.f32 %v562, 0.5
        %v565 = vmul.f32 %v563, 0.5
        %vm566 = vcmp.gt.f32.partialorder %v555, 20.0
        %vm567 = vcmp.gt.f32.partialorder %v557, 20.0
        %v568 = vmin.f32 %v555, 20.0
        %v569 = vmin.f32 %v557, 20.0
        %v570 = vmul.f32 %v568, 1.442695
        %v571 = vpow.pop %v570
        %v572 = vmul.f32 %v569, 1.442695
        %v573 = vpow.pop %v572
        %v574 = vadd.f32 %v571, 1.0
        %v575 = vlog2.pop %v574
        %v576 = vmul.f32 %v575, 0.6931472
        %v577 = vmul.f32 -0.5, %v571
        %v578 = vadd.f32 %v577, 1.0
        %v579 = vmul.f32 %v578, %v571
        %v580 = vand.u32 2147483647, %v571
        %vm581 = vcmp.lt.f32.partialorder %v580, 0.0004427343
        %v582 = vsel %vm581, %v579, %v576
        %v583 = vadd.f32 %v573, 1.0
        %v584 = vlog2.pop %v583
        %v585 = vmul.f32 %v584, 0.6931472
        %v586 = vmul.f32 -0.5, %v573
        %v587 = vadd.f32 %v586, 1.0
        %v588 = vmul.f32 %v587, %v573
        %v589 = vand.u32 2147483647, %v573
        %vm590 = vcmp.lt.f32.partialorder %v589, 0.0004427343
        %v591 = vsel %vm590, %v588, %v585
        %v592 = vsel %vm566, %v555, %v582
        %v593 = vsel %vm567, %v557, %v591
        %v594 = vmul.f32 %v564, %v592
        %v595 = vmul.f32 %v565, %v593
        %598 = vrot.lane.b32.xlu0 %v594, 96
        %v599 = vpop.permute.xlu0 %598
        %600 = vrot.lane.b32.xlu0 %v595, 96
        %v601 = vpop.permute.xlu0 %600
        %v604 = vadd.f32 %v594, %v599
        %v605 = vadd.f32 %v595, %v601
        %606 = vrot.lane.b32.xlu0 %v594, 64
        %v607 = vpop.permute.xlu0 %606
        %608 = vrot.lane.b32.xlu0 %v595, 64
        %v609 = vpop.permute.xlu0 %608
        %v612 = vadd.f32 %v604, %v607
        %v613 = vadd.f32 %v605, %v609
        %614 = vrot.lane.b32.xlu0 %v594, 32
        %v615 = vpop.permute.xlu0 %614
        %616 = vrot.lane.b32.xlu0 %v595, 32
        %v617 = vpop.permute.xlu0 %616
        %v620 = vadd.f32 %v612, %v615
        %v621 = vadd.f32 %v613, %v617
        %v622 = vld [vmem:[%s5] sm:$0x1]
        %v623 = vld [vmem:[%s5 + $0x1] sm:$0x1]
        %v624 = vlaneseq
        %v625 = vshrl.u32 %v624, 7
        %v626 = vsub.s32 0, %v625
        %v627 = vrot.slane %v622, %v626
        %v628 = vmul.f32 %v620, %v627
        %v629 = vmul.f32 %v621, %v627
        %v630 = vadd.f32 %v364, %v628
        %v631 = vadd.f32 %v365, %v629
        %v632 = vlaneseq
        %v633 = vshrl.u32 %v632, 7
        %v634 = vsub.s32 0, %v633
        %v635 = vrot.slane %v623, %v634
        %v636 = vadd.f32 %v630, %v635
        %v637 = vadd.f32 %v631, %v635
        %vm638 = vcmp.gt.f32.partialorder %v636, 20.0
        %vm639 = vcmp.gt.f32.partialorder %v637, 20.0
        %v640 = vmin.f32 %v636, 20.0
        %v641 = vmin.f32 %v637, 20.0
        %v642 = vmul.f32 %v640, 1.442695
        %v643 = vpow.pop %v642
        %v644 = vmul.f32 %v641, 1.442695
        %v645 = vpow.pop %v644
        %v646 = vadd.f32 %v643, 1.0
        %v647 = vlog2.pop %v646
        %v648 = vmul.f32 %v647, 0.6931472
        %v649 = vmul.f32 -0.5, %v643
        %v650 = vadd.f32 %v649, 1.0
        %v651 = vmul.f32 %v650, %v643
        %v652 = vand.u32 2147483647, %v643
        %vm653 = vcmp.lt.f32.partialorder %v652, 0.0004427343
        %v654 = vsel %vm653, %v651, %v648
        %v655 = vadd.f32 %v645, 1.0
        %v656 = vlog2.pop %v655
        %v657 = vmul.f32 %v656, 0.6931472
        %v658 = vmul.f32 -0.5, %v645
        %v659 = vadd.f32 %v658, 1.0
        %v660 = vmul.f32 %v659, %v645
        %v661 = vand.u32 2147483647, %v645
        %vm662 = vcmp.lt.f32.partialorder %v661, 0.0004427343
        %v663 = vsel %vm662, %v660, %v657
        %v664 = vsel %vm638, %v636, %v654
        %v665 = vsel %vm639, %v637, %v663
        %666 = vst.msk [vmem:[%s310] sm:$0xff] %vm374, %v664
        %667 = vst.msk [vmem:[%s310 + $0x8] sm:$0xff] %vm374, %v665
        %s668 = smul.u32 2, %s21
        %p669 = scmp.lt.s32.totalorder %s668, 7
        %s670 = scalar_select %p669, %s668, 7
        %s671 = smul.addr %s670, 8
        %s672 = scalar_lea.vmem %s6, %s671
        // Predicated region
        $region53: #{tpu_custom_call.1} parent=43 // pred_check
          %p673 = pneg %p175
        $region54: #{tpu_custom_call.1} parent=43 // pred_check_branch
          %675 = sbr.rel (%p673) target = $region56
        $region55: #{tpu_custom_call.1} parent=43 // pred_region
          %s676 = smul.u32 2, %s21
        $region56: #{tpu_custom_call.1} parent=43 // pred_fallthru
          _
      $region44: #{tpu_custom_call.1} parent=5 // pred_fallthru
        _
      %p677 = scmp.le.s32.totalorder 2, %s16
      // Predicated region
      $region57: #{tpu_custom_call.1} parent=5 // pred_check
        %p678 = pneg %p677
      $region58: #{tpu_custom_call.1} parent=5 // pred_check_branch
        %680 = sbr.rel (%p678) target = $region60
      $region59: #{tpu_custom_call.1} parent=5 // pred_region
        %s681 = ssub.s32 %s16, 2
        // Predicated region
        $region61: #{tpu_custom_call.1} parent=59 // pred_check
          %p682 = pneg %p181
        $region62: #{tpu_custom_call.1} parent=59 // pred_check_branch
          %684 = sbr.rel (%p682) target = $region64
        $region63: #{tpu_custom_call.1} parent=59 // pred_region
          %s685 = smul.u32 2, %s22
          %p686 = scmp.lt.s32.totalorder %s685, 7
          %s687 = scalar_select %p686, %s685, 7
          %s688 = smul.addr %s687, 8
          %s689 = scalar_lea.vmem %s6, %s688
        $region64: #{tpu_custom_call.1} parent=59 // pred_fallthru
          _
      $region60: #{tpu_custom_call.1} parent=5 // pred_fallthru
        _
    $region6: #{tpu_custom_call.1} parent=1 // loop_footer
      %s20 = sadd.s32 1, %s16
    $region7: #{tpu_custom_call.1} parent=1 // loop_footer_branch
      %15 = sbr.rel target = $region3
    $region8: #{tpu_custom_call.1} parent=1 // loop_exit
      _
    %690 = vsyncpa [#allocation3], 1
    %s691 = scalar_lea.sflag [#allocation3], 1
    %692 = vsyncpa %s691, 1
    %693 = vsyncpa [#allocation5], 1

</llo_original>
